<compile_context>
chip_gen: v6e
topology: v6e:2x2x1
jax: 0.10.0
libtpu: 0.0.40
codegen_flags: <defaults>
</compile_context>

<pallas_src>
import functools

import jax
import jax.numpy as jnp
from jax import lax
from jax.experimental import pallas as pl
from jax.experimental.pallas import tpu as pltpu


def copynet_kernel(ptr_ref, alpha_ref, pgen_ref, dist_ref, out_ref, *, n_gen_tiles):
    """One (batch-tile, vocab-tile) step of the copy/generate mixture.

    ptr_ref:   (B, S)   int32  source-token ids in the extended vocab
    alpha_ref: (B, S)   f32    attention weights for this decode row
    pgen_ref:  (B, 1)   f32    generation probability
    dist_ref:  (B, Wd)  f32    generative vocab distribution (zero-padded)
    out_ref:   (B, Vt)  f32    this lane window of the mixed distribution

    n_gen_tiles: None -> single vocab tile; dist covers lanes [0, Wd) of it.
                 int  -> Vt-wide vocab tiling; tiles j < n_gen_tiles carry the
                         (full-width, zero-padded) generative block.
    """
    Vt = out_ref.shape[-1]
    Wd = dist_ref.shape[-1]

    ptr = ptr_ref[...]                 # (B, S) int32
    alpha = alpha_ref[...]             # (B, S) f32
    pgen = pgen_ref[...]               # (B, 1) f32

    # Lane iota only over the current vocab window; the compare broadcasts.
    lane = lax.broadcasted_iota(jnp.int32, (1, 1, Vt), 2)
    if n_gen_tiles is not None:
        lane = lane + pl.program_id(1) * Vt

    # copyp[b, w] = sum_l alpha[b, l] * (ptr[b, l] == w)  — fused select + sum,
    # no f32 one-hot materialized.
    sel = jnp.where(ptr[:, :, None] == lane, alpha[:, :, None], 0.0)   # (B, S, Vt)
    copyp = jnp.sum(sel, axis=1)                                       # (B, Vt)
    mixed = (1.0 - pgen) * copyp                                       # (B, Vt)

    if n_gen_tiles is None:
        # Single vocab tile: dist occupies the first Wd lanes.
        if Wd == Vt:
            out_ref[...] = (mixed + pgen * dist_ref[...]).astype(out_ref.dtype)
        else:
            out_ref[:, :Wd] = (mixed[:, :Wd] + pgen * dist_ref[...]).astype(out_ref.dtype)
            out_ref[:, Wd:] = mixed[:, Wd:].astype(out_ref.dtype)
    else:
        j = pl.program_id(1)

        @pl.when(j < n_gen_tiles)
        def _():
            out_ref[...] = (mixed + pgen * dist_ref[...]).astype(out_ref.dtype)

        @pl.when(j >= n_gen_tiles)
        def _():
            out_ref[...] = mixed.astype(out_ref.dtype)


def _round_up(x, m):
    return ((x + m - 1) // m) * m


def _choose_tiles(rows, nl_src, ve_pad, budget_bytes):
    """Pick (b_tile, v_tile): b_tile a multiple of 8 (full sublanes), v_tile a
    multiple of 128 (lane-dense) sized so the dominant in-kernel temporaries
    plus double-buffered I/O blocks stay under a conservative VMEM budget that
    fits v5e / v6e / v7x scoped VMEM."""
    b_tile = min(64, _round_up(max(rows, 1), 8))
    # bytes per output lane per step ≈ select temp (nl_src rows) + copyp/mixed
    # + double-buffered dist & out blocks (~6 rows worth)
    per_lane = 4 * b_tile * (nl_src + 6)
    v_tile = max(128, (budget_bytes // per_lane) // 128 * 128)
    v_tile = min(v_tile, ve_pad)
    return b_tile, v_tile


def copynet_forward(inputs, vmem_budget_bytes=16 * 1024 * 1024):
    """Mirrors CopyNet.forward / calc_copy_proba exactly (any nl_dec)."""
    dist_t = jnp.asarray(inputs['dist_t'], jnp.float32)    # (nb, nl_dec, V)
    p_gen = jnp.asarray(inputs['p_gen'], jnp.float32)      # (nb, nl_dec, 1)
    alph_t = jnp.asarray(inputs['alph_t'], jnp.float32)    # (nb, nl_src, nl_dec)
    batch_vocab = inputs['batch_vocab']                    # (V_ext,) — length only
    pointer = jnp.asarray(inputs['pointer'], jnp.int32)    # (nb, nl_src)

    if p_gen.shape[-1] >= 2:
        raise ValueError('Not support p_gen ndim > 1')

    nb, nl_dec, V = dist_t.shape
    nl_src = pointer.shape[1]
    V_ext = batch_vocab.shape[0]

    # ---- fold nl_dec into the row axis; squeeze everything to 2-D slabs ----
    rows = nb * nl_dec
    dist2 = dist_t.reshape(rows, V)
    pgen2 = p_gen.reshape(rows, 1)
    alpha2 = jnp.transpose(alph_t, (0, 2, 1)).reshape(rows, nl_src)
    ptr2 = jnp.broadcast_to(pointer[:, None, :], (nb, nl_dec, nl_src)).reshape(rows, nl_src)

    # ---- lane-dense padding and tile selection ----
    v_pad = _round_up(V, 128)
    ve_pad = _round_up(V_ext, 128)
    b_tile, v_tile = _choose_tiles(rows, nl_src, ve_pad, vmem_budget_bytes)

    if v_tile >= ve_pad:
        v_tile = ve_pad
        n_tiles = 1
        n_gen_tiles = None
        dist_w = v_pad                       # dist kept at its own (narrow) width
        dist_map = lambda b, j: (b, 0)
        dist_blk_w = dist_w
    else:
        ve_pad = _round_up(V_ext, v_tile)
        n_tiles = ve_pad // v_tile
        dist_w = _round_up(V, v_tile)        # pad dist so every gen tile is full-width
        n_gen_tiles = dist_w // v_tile
        ng = n_gen_tiles
        dist_map = lambda b, j: (b, jnp.minimum(j, ng - 1))
        dist_blk_w = v_tile

    rows_pad = _round_up(rows, b_tile)

    # Zero-pad rows (tail) and lanes (up to the lane-dense widths); padded rows
    # have alpha = pgen = dist = 0, so their output rows are 0 and sliced off.
    dist_p = jnp.pad(dist2, ((0, rows_pad - rows), (0, dist_w - V)))
    pgen_p = jnp.pad(pgen2, ((0, rows_pad - rows), (0, 0)))
    alpha_p = jnp.pad(alpha2, ((0, rows_pad - rows), (0, 0)))
    ptr_p = jnp.pad(ptr2, ((0, rows_pad - rows), (0, 0)))

    grid = (rows_pad // b_tile, n_tiles)

    kernel = functools.partial(copynet_kernel, n_gen_tiles=n_gen_tiles)

    out_p = pl.pallas_call(
        kernel,
        out_shape=jax.ShapeDtypeStruct((rows_pad, ve_pad), jnp.float32),
        grid_spec=pltpu.PrefetchScalarGridSpec(
            num_scalar_prefetch=0,
            grid=grid,
            in_specs=[
                pl.BlockSpec((b_tile, nl_src), lambda b, j: (b, 0)),      # pointer
                pl.BlockSpec((b_tile, nl_src), lambda b, j: (b, 0)),      # alpha
                pl.BlockSpec((b_tile, 1), lambda b, j: (b, 0)),           # p_gen
                pl.BlockSpec((b_tile, dist_blk_w), dist_map),             # dist_t
            ],
            out_specs=pl.BlockSpec((b_tile, v_tile), lambda b, j: (b, j)),
        ),
        compiler_params=pltpu.CompilerParams(
            dimension_semantics=("parallel", "parallel"),
            vmem_limit_bytes=32 * 1024 * 1024),
    )(ptr_p, alpha_p, pgen_p, dist_p)

    return out_p[:rows, :V_ext].reshape(nb, nl_dec, V_ext)


def reference_forward(inputs):
    """Pure-JAX transcription of CopyNet.calc_copy_proba (the PyTorch spec)."""
    dist_t, p_gen, alph_t = inputs['dist_t'], inputs['p_gen'], inputs['alph_t']
    batch_vocab, pointer = inputs['batch_vocab'], inputs['pointer']
    if p_gen.shape[-1] >= 2:
        raise ValueError('Not support p_gen ndim > 1')
    nb, nl_dec, V = dist_t.shape
    V_ext = batch_vocab.shape[0]
    padding = jnp.zeros((nb, nl_dec, V_ext - V), jnp.float32)
    prob_vocab = p_gen * jnp.concatenate([dist_t, padding], axis=2)
    onehot = jax.nn.one_hot(pointer.reshape(-1), V_ext, dtype=jnp.float32)
    onehot = onehot.reshape(nb, pointer.shape[1], V_ext)
    copyp = jnp.einsum('blt,blw->btw', alph_t, onehot,
                       precision=jax.lax.Precision.HIGHEST)
    prob_posi = (1.0 - p_gen) * copyp
    return prob_vocab + prob_posi


if __name__ == "__main__":
    key = jax.random.PRNGKey(0)

    def make_inputs(k0, nb, nl_src, nl_dec, V, V_ext):
        k = jax.random.split(k0, 4)
        dist_t = jax.nn.softmax(jax.random.normal(k[0], (nb, nl_dec, V), jnp.float32), axis=-1)
        p_gen = jax.nn.sigmoid(jax.random.normal(k[1], (nb, nl_dec, 1), jnp.float32))
        alph_t = jax.nn.softmax(jax.random.normal(k[2], (nb, nl_src, nl_dec), jnp.float32), axis=1)
        pointer = jax.random.randint(k[3], (nb, nl_src), 0, V_ext, dtype=jnp.int32)
        batch_vocab = jnp.arange(V_ext, dtype=jnp.int32)   # only its length is used
        return dict(dist_t=dist_t, p_gen=p_gen, alph_t=alph_t,
                    batch_vocab=batch_vocab, pointer=pointer)

    configs = [
        # (nb, nl_src, nl_dec, V, V_ext, vmem_budget)
        (4, 8, 1, 32, 48, None),            # single-step decode, single full-store tile
        (3, 5, 2, 100, 150, None),          # awkward nb, nl_dec>1, head/tail store path
        (2, 5, 1, 200, 1000, 128 * 1024),   # tiny budget -> exercises V_ext lane tiling
    ]

    keys = jax.random.split(key, len(configs))
    for cfg_key, (nb, nl_src, nl_dec, V, V_ext, budget) in zip(keys, configs):
        inputs = make_inputs(cfg_key, nb, nl_src, nl_dec, V, V_ext)
        kwargs = {} if budget is None else dict(vmem_budget_bytes=budget)
        proba = copynet_forward(inputs, **kwargs)
        jax.block_until_ready(proba)
        proba_ref = reference_forward(inputs)
        assert proba.shape == (nb, nl_dec, V_ext)
        err = float(jnp.max(jnp.abs(proba - proba_ref)))
        assert jnp.allclose(proba, proba_ref, atol=1e-5, rtol=1e-5), err

    print("KERNEL_OK")
</pallas_src>

<mosaic_0001>
module attributes {stable_mosaic.version = 11 : i64} {
  func.func @copynet_kernel(%arg0: i32, %arg1: i32, %arg2: memref<8x8xi32, #tpu.memory_space<vmem>>, %arg3: memref<8x8xf32, #tpu.memory_space<vmem>>, %arg4: memref<8x1xf32, #tpu.memory_space<vmem>>, %arg5: memref<8x128xf32, #tpu.memory_space<vmem>>, %arg6: memref<8x128xf32, #tpu.memory_space<vmem>>) attributes {dimension_semantics = [#tpu.dimension_semantics<parallel>, #tpu.dimension_semantics<parallel>], iteration_bounds = array<i64: 1, 1>, scalar_prefetch = 0 : i64, scratch_operands = 0 : i64, tpu.core_type = #tpu.core_type<tc>, window_params = [{transform_indices = @transform_0, window_bounds = array<i64: 8, 8>}, {transform_indices = @transform_1, window_bounds = array<i64: 8, 8>}, {transform_indices = @transform_2, window_bounds = array<i64: 8, 1>}, {transform_indices = @transform_3, window_bounds = array<i64: 8, 128>}, {transform_indices = @transform_4, window_bounds = array<i64: 8, 128>}]} {
    %c0 = arith.constant 0 : index
    %c0_0 = arith.constant 0 : index
    %0 = vector.load %arg2[%c0, %c0_0] : memref<8x8xi32, #tpu.memory_space<vmem>>, vector<8x8xi32>
    %c0_1 = arith.constant 0 : index
    %c0_2 = arith.constant 0 : index
    %1 = vector.load %arg3[%c0_1, %c0_2] : memref<8x8xf32, #tpu.memory_space<vmem>>, vector<8x8xf32>
    %c0_3 = arith.constant 0 : index
    %c0_4 = arith.constant 0 : index
    %2 = vector.load %arg4[%c0_3, %c0_4] : memref<8x1xf32, #tpu.memory_space<vmem>>, vector<8x1xf32>
    %3 = tpu.iota {dimensions = array<i32: 2>} : vector<1x1x128xi32>
    %4 = vector.shape_cast %0 : vector<8x8xi32> to vector<8x8x1xi32>
    %5 = vector.broadcast %4 : vector<8x8x1xi32> to vector<8x8x128xi32>
    %6 = vector.broadcast %3 : vector<1x1x128xi32> to vector<8x8x128xi32>
    %7 = arith.cmpi eq, %5, %6 : vector<8x8x128xi32>
    %8 = vector.shape_cast %1 : vector<8x8xf32> to vector<8x8x1xf32>
    %cst = arith.constant 0.000000e+00 : f32
    %9 = vector.shape_cast %8 : vector<8x8x1xf32> to vector<8x8x1xf32>
    %10 = vector.broadcast %9 : vector<8x8x1xf32> to vector<8x8x128xf32>
    %11 = vector.broadcast %cst : f32 to vector<8x8x128xf32>
    %12 = arith.select %7, %10, %11 : vector<8x8x128xi1>, vector<8x8x128xf32>
    %cst_5 = arith.constant dense<0.000000e+00> : vector<8x128xf32>
    %13 = vector.multi_reduction <add>, %12, %cst_5 [1] : vector<8x8x128xf32> to vector<8x128xf32>
    %cst_6 = arith.constant 1.000000e+00 : f32
    %14 = vector.broadcast %cst_6 : f32 to vector<8x1xf32>
    %15 = arith.subf %14, %2 : vector<8x1xf32>
    %16 = vector.broadcast %15 : vector<8x1xf32> to vector<8x128xf32>
    %17 = arith.mulf %16, %13 : vector<8x128xf32>
    %c0_7 = arith.constant 0 : index
    %c0_8 = arith.constant 0 : index
    %18 = vector.load %arg5[%c0_7, %c0_8] : memref<8x128xf32, #tpu.memory_space<vmem>>, vector<8x128xf32>
    %19 = vector.broadcast %2 : vector<8x1xf32> to vector<8x128xf32>
    %20 = arith.mulf %19, %18 : vector<8x128xf32>
    %21 = arith.addf %17, %20 : vector<8x128xf32>
    %c0_9 = arith.constant 0 : index
    %c0_10 = arith.constant 0 : index
    %22 = vector.load %arg6[%c0_9, %c0_10] : memref<8x128xf32, #tpu.memory_space<vmem>>, vector<8x128xf32>
    tpu.vector_store %arg6[%c0_9, %c0_10], %21 {strides = array<i32>} : memref<8x128xf32, #tpu.memory_space<vmem>>, vector<8x128xf32>,
    return
  }
  func.func @transform_0(%arg0: i32, %arg1: i32) -> (i32, i32) {
    %c0_i32 = arith.constant 0 : i32
    %c0_i32_0 = arith.constant 0 : i32
    return %arg0, %c0_i32 : i32, i32
  }
  func.func @transform_1(%arg0: i32, %arg1: i32) -> (i32, i32) {
    %c0_i32 = arith.constant 0 : i32
    %c0_i32_0 = arith.constant 0 : i32
    return %arg0, %c0_i32 : i32, i32
  }
  func.func @transform_2(%arg0: i32, %arg1: i32) -> (i32, i32) {
    %c0_i32 = arith.constant 0 : i32
    %c0_i32_0 = arith.constant 0 : i32
    return %arg0, %c0_i32 : i32, i32
  }
  func.func @transform_3(%arg0: i32, %arg1: i32) -> (i32, i32) {
    %c0_i32 = arith.constant 0 : i32
    %c0_i32_0 = arith.constant 0 : i32
    return %arg0, %c0_i32 : i32, i32
  }
  func.func @transform_4(%arg0: i32, %arg1: i32) -> (i32, i32) {
    %c0_i32 = arith.constant 0 : i32
    return %arg0, %arg1 : i32, i32
  }
}

</mosaic_0001>

<llo_original>
// kernel: tpu_custom_call.1
$region0: #{tpu_custom_call.1}
  #allocation0 [shape = 'u32[]', space=smem, size = 0x4, offset = 0x4, fixed_abs, tag = 'smem constant byte address 0x4 - core index']
  #allocation1 [shape = 'u32[144,128]{1,0:T(1,128)}', space=vmem, size = 0x12000, scoped, tag = 'internal scratch']
  %s0 = inlined_call_operand.vmem [shape: s32[8,8], index: 0, kind: input, shape index: {}]
  %s1 = inlined_call_operand.hbm [shape: f32[8,8], index: 1, kind: input, shape index: {}]
  %s2 = inlined_call_operand.vmem [shape: f32[8,1], index: 2, kind: input, shape index: {}]
  %s3 = inlined_call_operand.hbm [shape: f32[8,128], index: 3, kind: input, shape index: {}]
  %s4 = inlined_call_operand.hbm [shape: f32[8,128], index: 4, kind: output, shape index: {}]
  %s5 = sld [smem:[#allocation0]]
  $region34: #{tpu_custom_call.1} parent=0
    _
  %s7 = ssub.s32 1, %s5
  %s8 = scalar_select 0, %s7, %s5
  $region1: #{tpu_custom_call.1} parent=0
    #allocation2 [shape = 'u8[4096]{0}', space=vmem, size = 0x1000, scoped, tag = 'input window, operand 1, single buffered']
    #allocation3 [shape = 's32[1]{0}', space=sflag, size = 0x4, scoped, tag = 'scoped memory for tpu_custom_call.1']
    #allocation4 [shape = 's32[1]{0}', space=sflag, size = 0x4, scoped, tag = 'scoped memory for tpu_custom_call.1']
    #allocation5 [shape = 'u8[4096]{0}', space=vmem, size = 0x1000, scoped, tag = 'input window, operand 3, single buffered']
    #allocation6 [shape = 's32[1]{0}', space=sflag, size = 0x4, scoped, tag = 'scoped memory for tpu_custom_call.1']
    #allocation7 [shape = 'u8[4096]{0}', space=vmem, size = 0x1000, scoped, tag = 'output window, operand 0, single buffered']
    %9 = vsyncpa [#allocation3], 0
    %10 = vsyncpa [#allocation6], 0
    %11 = vsyncpa [#allocation4], 0
    // Predicated region
    $region2: #{tpu_custom_call.1} parent=1 // pred_check
      _
    $region3: #{tpu_custom_call.1} parent=1 // pred_check_branch
      %13 = sbr.rel (0) target = $region5
    $region4: #{tpu_custom_call.1} parent=1 // pred_region
      _
    $region5: #{tpu_custom_call.1} parent=1 // pred_fallthru
      _
    // Predicated region
    $region6: #{tpu_custom_call.1} parent=1 // pred_check
      _
    $region7: #{tpu_custom_call.1} parent=1 // pred_check_branch
      %15 = sbr.rel (0) target = $region9
    $region8: #{tpu_custom_call.1} parent=1 // pred_region
      %s17 = ssub.s32 128, 128
      %18 = vsyncadd [#allocation3], %s17
      %s20 = sshll.u32 [#allocation2], 4
      %s21 = int_to_ptr.vmem [resolvable:$true] %s20
      %23 = dma.hbm_to_vmem [thread:$0]  %s1, 128, %s21, [#allocation3]
    $region9: #{tpu_custom_call.1} parent=1 // pred_fallthru
      _
    // Predicated region
    $region10: #{tpu_custom_call.1} parent=1 // pred_check
      _
    $region11: #{tpu_custom_call.1} parent=1 // pred_check_branch
      %25 = sbr.rel (0) target = $region13
    $region12: #{tpu_custom_call.1} parent=1 // pred_region
      _
    $region13: #{tpu_custom_call.1} parent=1 // pred_fallthru
      _
    // Predicated region
    $region14: #{tpu_custom_call.1} parent=1 // pred_check
      _
    $region15: #{tpu_custom_call.1} parent=1 // pred_check_branch
      %27 = sbr.rel (0) target = $region17
    $region16: #{tpu_custom_call.1} parent=1 // pred_region
      %s29 = ssub.s32 128, 128
      %30 = vsyncadd [#allocation6], %s29
      %s32 = sshll.u32 [#allocation5], 4
      %s33 = int_to_ptr.vmem [resolvable:$true] %s32
      %35 = dma.hbm_to_vmem [thread:$0]  %s3, 128, %s33, [#allocation6]
    $region17: #{tpu_custom_call.1} parent=1 // pred_fallthru
      _
    // Predicated region
    $region18: #{tpu_custom_call.1} parent=1 // pred_check
      _
    $region19: #{tpu_custom_call.1} parent=1 // pred_check_branch
      %37 = sbr.rel (0) target = $region21
    $region20: #{tpu_custom_call.1} parent=1 // pred_region
      %38 = dma.done [#allocation3], 128
    $region21: #{tpu_custom_call.1} parent=1 // pred_fallthru
      _
    // Predicated region
    $region22: #{tpu_custom_call.1} parent=1 // pred_check
      _
    $region23: #{tpu_custom_call.1} parent=1 // pred_check_branch
      %40 = sbr.rel (0) target = $region25
    $region24: #{tpu_custom_call.1} parent=1 // pred_region
      %41 = dma.done [#allocation6], 128
    $region25: #{tpu_custom_call.1} parent=1 // pred_fallthru
      _
    %v42 = vld [vmem:[%s0] sm:$0xff]
    %v43 = vld [vmem:[#allocation2] sm:$0xff]
    %v44 = vld [vmem:[%s2] sm:$0xff]
    %v45 = vlaneseq
    %v46 = vand.u32 %v45, 127
    %v47 = vlaneseq
    %v48 = vshrl.u32 %v47, 7
    %v49 = vsub.s32 0, %v48
    %v50 = vrot.slane %v42, %v49
    %52 = vbcast.lane.b32.xlu0 %v50, 256
    %v53 = vpop.permute.xlu0 %52
    %v54 = vlaneseq
    %v55 = vshrl.u32 %v54, 7
    %v56 = vsub.s32 1, %v55
    %v57 = vrot.slane %v42, %v56
    %59 = vbcast.lane.b32.xlu0 %v57, 256
    %v60 = vpop.permute.xlu0 %59
    %v61 = vlaneseq
    %v62 = vshrl.u32 %v61, 7
    %v63 = vsub.s32 2, %v62
    %v64 = vrot.slane %v42, %v63
    %66 = vbcast.lane.b32.xlu0 %v64, 256
    %v67 = vpop.permute.xlu0 %66
    %v68 = vlaneseq
    %v69 = vshrl.u32 %v68, 7
    %v70 = vsub.s32 3, %v69
    %v71 = vrot.slane %v42, %v70
    %73 = vbcast.lane.b32.xlu0 %v71, 256
    %v74 = vpop.permute.xlu0 %73
    %v75 = vlaneseq
    %v76 = vshrl.u32 %v75, 7
    %v77 = vsub.s32 4, %v76
    %v78 = vrot.slane %v42, %v77
    %80 = vbcast.lane.b32.xlu0 %v78, 256
    %v81 = vpop.permute.xlu0 %80
    %v82 = vlaneseq
    %v83 = vshrl.u32 %v82, 7
    %v84 = vsub.s32 5, %v83
    %v85 = vrot.slane %v42, %v84
    %87 = vbcast.lane.b32.xlu0 %v85, 256
    %v88 = vpop.permute.xlu0 %87
    %v89 = vlaneseq
    %v90 = vshrl.u32 %v89, 7
    %v91 = vsub.s32 6, %v90
    %v92 = vrot.slane %v42, %v91
    %94 = vbcast.lane.b32.xlu0 %v92, 256
    %v95 = vpop.permute.xlu0 %94
    %v96 = vlaneseq
    %v97 = vshrl.u32 %v96, 7
    %v98 = vsub.s32 7, %v97
    %v99 = vrot.slane %v42, %v98
    %101 = vbcast.lane.b32.xlu0 %v99, 256
    %v102 = vpop.permute.xlu0 %101
    %vm103 = vcmp.eq.s32.totalorder %v53, %v46
    %vm104 = vcmp.eq.s32.totalorder %v60, %v46
    %vm105 = vcmp.eq.s32.totalorder %v67, %v46
    %vm106 = vcmp.eq.s32.totalorder %v74, %v46
    %vm107 = vcmp.eq.s32.totalorder %v81, %v46
    %vm108 = vcmp.eq.s32.totalorder %v88, %v46
    %vm109 = vcmp.eq.s32.totalorder %v95, %v46
    %vm110 = vcmp.eq.s32.totalorder %v102, %v46
    %v111 = vlaneseq
    %v112 = vshrl.u32 %v111, 7
    %v113 = vsub.s32 0, %v112
    %v114 = vrot.slane %v43, %v113
    %116 = vbcast.lane.b32.xlu0 %v114, 256
    %v117 = vpop.permute.xlu0 %116
    %v118 = vlaneseq
    %v119 = vshrl.u32 %v118, 7
    %v120 = vsub.s32 1, %v119
    %v121 = vrot.slane %v43, %v120
    %123 = vbcast.lane.b32.xlu0 %v121, 256
    %v124 = vpop.permute.xlu0 %123
    %v125 = vlaneseq
    %v126 = vshrl.u32 %v125, 7
    %v127 = vsub.s32 2, %v126
    %v128 = vrot.slane %v43, %v127
    %130 = vbcast.lane.b32.xlu0 %v128, 256
    %v131 = vpop.permute.xlu0 %130
    %v132 = vlaneseq
    %v133 = vshrl.u32 %v132, 7
    %v134 = vsub.s32 3, %v133
    %v135 = vrot.slane %v43, %v134
    %137 = vbcast.lane.b32.xlu0 %v135, 256
    %v138 = vpop.permute.xlu0 %137
    %v139 = vlaneseq
    %v140 = vshrl.u32 %v139, 7
    %v141 = vsub.s32 4, %v140
    %v142 = vrot.slane %v43, %v141
    %144 = vbcast.lane.b32.xlu0 %v142, 256
    %v145 = vpop.permute.xlu0 %144
    %v146 = vlaneseq
    %v147 = vshrl.u32 %v146, 7
    %v148 = vsub.s32 5, %v147
    %v149 = vrot.slane %v43, %v148
    %151 = vbcast.lane.b32.xlu0 %v149, 256
    %v152 = vpop.permute.xlu0 %151
    %v153 = vlaneseq
    %v154 = vshrl.u32 %v153, 7
    %v155 = vsub.s32 6, %v154
    %v156 = vrot.slane %v43, %v155
    %158 = vbcast.lane.b32.xlu0 %v156, 256
    %v159 = vpop.permute.xlu0 %158
    %v160 = vlaneseq
    %v161 = vshrl.u32 %v160, 7
    %v162 = vsub.s32 7, %v161
    %v163 = vrot.slane %v43, %v162
    %165 = vbcast.lane.b32.xlu0 %v163, 256
    %v166 = vpop.permute.xlu0 %165
    %v167 = vsel %vm103, %v117, 0.0
    %v168 = vsel %vm104, %v124, 0.0
    %v169 = vsel %vm105, %v131, 0.0
    %v170 = vsel %vm106, %v138, 0.0
    %v171 = vsel %vm107, %v145, 0.0
    %v172 = vsel %vm108, %v152, 0.0
    %v173 = vsel %vm109, %v159, 0.0
    %v174 = vsel %vm110, %v166, 0.0
    %v175 = vrot.slane %v167, 4
    %v176 = vadd.f32 %v167, %v175
    %v177 = vrot.slane %v176, 2
    %v178 = vadd.f32 %v176, %v177
    %v179 = vrot.slane %v178, 1
    %v180 = vadd.f32 %v178, %v179
    %v181 = vrot.slane %v168, 4
    %v182 = vadd.f32 %v168, %v181
    %v183 = vrot.slane %v182, 2
    %v184 = vadd.f32 %v182, %v183
    %v185 = vrot.slane %v184, 1
    %v186 = vadd.f32 %v184, %v185
    %v187 = vrot.slane %v169, 4
    %v188 = vadd.f32 %v169, %v187
    %v189 = vrot.slane %v188, 2
    %v190 = vadd.f32 %v188, %v189
    %v191 = vrot.slane %v190, 1
    %v192 = vadd.f32 %v190, %v191
    %v193 = vrot.slane %v170, 4
    %v194 = vadd.f32 %v170, %v193
    %v195 = vrot.slane %v194, 2
    %v196 = vadd.f32 %v194, %v195
    %v197 = vrot.slane %v196, 1
    %v198 = vadd.f32 %v196, %v197
    %v199 = vrot.slane %v171, 4
    %v200 = vadd.f32 %v171, %v199
    %v201 = vrot.slane %v200, 2
    %v202 = vadd.f32 %v200, %v201
    %v203 = vrot.slane %v202, 1
    %v204 = vadd.f32 %v202, %v203
    %v205 = vrot.slane %v172, 4
    %v206 = vadd.f32 %v172, %v205
    %v207 = vrot.slane %v206, 2
    %v208 = vadd.f32 %v206, %v207
    %v209 = vrot.slane %v208, 1
    %v210 = vadd.f32 %v208, %v209
    %v211 = vrot.slane %v173, 4
    %v212 = vadd.f32 %v173, %v211
    %v213 = vrot.slane %v212, 2
    %v214 = vadd.f32 %v212, %v213
    %v215 = vrot.slane %v214, 1
    %v216 = vadd.f32 %v214, %v215
    %v217 = vrot.slane %v174, 4
    %v218 = vadd.f32 %v174, %v217
    %v219 = vrot.slane %v218, 2
    %v220 = vadd.f32 %v218, %v219
    %v221 = vrot.slane %v220, 1
    %v222 = vadd.f32 %v220, %v221
    %v223 = vsub.f32 1.0, %v44
    %225 = vset.pattern.permute.xlu0 0
    %226 = vperm.xlu0 %225, %v223
    %v227 = vpop.permute.xlu0 %226
    %vm237 = vcmask 1041409
    %v238 = vsel %vm237, %v186, %v180
    %vm239 = vcmask 1042434
    %v240 = vsel %vm239, %v192, %v238
    %vm241 = vcmask 1043459
    %v242 = vsel %vm241, %v198, %v240
    %vm243 = vcmask 1044484
    %v244 = vsel %vm243, %v204, %v242
    %vm245 = vcmask 1045509
    %v246 = vsel %vm245, %v210, %v244
    %vm247 = vcmask 1046534
    %v248 = vsel %vm247, %v216, %v246
    %vm249 = vcmask 1047559
    %v250 = vsel %vm249, %v222, %v248
    %v252 = vmul.f32 %v227, %v250
    %v253 = vld [vmem:[#allocation5] sm:$0xff]
    %255 = vset.pattern.permute.xlu0 0
    %256 = vperm.xlu0 %255, %v44
    %v257 = vpop.permute.xlu0 %256
    %v259 = vmul.f32 %v257, %v253
    %v260 = vadd.f32 %v252, %v259
    %261 = vst [vmem:[#allocation7] sm:$0xff] %v260
    // Predicated region
    $region26: #{tpu_custom_call.1} parent=1 // pred_check
      _
    $region27: #{tpu_custom_call.1} parent=1 // pred_check_branch
      %263 = sbr.rel (0) target = $region29
    $region28: #{tpu_custom_call.1} parent=1 // pred_region
      %s265 = ssub.s32 128, 128
      %266 = vsyncadd [#allocation4], %s265
      %s268 = sshll.u32 [#allocation7], 4
      %s269 = int_to_ptr.vmem [resolvable:$true] %s268
      %271 = dma.vmem_to_hbm [thread:$0]  %s269, 128, %s4, [#allocation4]
    $region29: #{tpu_custom_call.1} parent=1 // pred_fallthru
      _
    // Predicated region
    $region30: #{tpu_custom_call.1} parent=1 // pred_check
      _
    $region31: #{tpu_custom_call.1} parent=1 // pred_check_branch
      %273 = sbr.rel (0) target = $region33
    $region32: #{tpu_custom_call.1} parent=1 // pred_region
      %274 = dma.done [#allocation4], 128
    $region33: #{tpu_custom_call.1} parent=1 // pred_fallthru
      _
    %275 = vsyncpa [#allocation3], 1
    %276 = vsyncpa [#allocation6], 1
    %277 = vsyncpa [#allocation4], 1

</llo_original>
